<compile_context>
chip_gen: v5e
topology: v5e:2x2
jax: 0.10.0
libtpu: 0.0.40
codegen_flags: <defaults>
</compile_context>

<pallas_src>
import jax
import jax.numpy as jnp
from jax.experimental import pallas as pl
from jax.experimental.pallas import tpu as pltpu


def _round_up(n: int, m: int) -> int:
    return (n + m - 1) // m * m


def _pad2d(a, rows, cols, dtype):
    a = a.astype(dtype)
    pr, pc = rows - a.shape[0], cols - a.shape[1]
    if pr or pc:
        a = jnp.pad(a, ((0, pr), (0, pc)))
    return a


def _vmem_ceiling_bytes() -> int:
    """Chip-aware scoped-VMEM ceiling: 48 MiB on v7x (64 MiB physical),
    96 MiB on 128 MiB parts (v5e/v6e).  Conservative fallback if the query
    is unavailable."""
    try:
        cap = int(getattr(pltpu.get_tpu_info(), "vmem_capacity_bytes", 0))
    except Exception:
        cap = 0
    if cap and cap > 96 * 1024 * 1024:      # 128 MiB parts (v5e / v6e)
        return 96 * 1024 * 1024
    return 48 * 1024 * 1024                 # v7x (or unknown): stay safe


def mlp_kernel(x_ref, w1_ref, b1_ref, w2_ref, b2_ref, w3_ref, b3_ref, o_ref):
    # fc1 + relu : bf16 operands on the MXU, f32 accumulation, f32 bias add.
    h = jnp.dot(x_ref[...], w1_ref[...], preferred_element_type=jnp.float32)
    h = jnp.maximum(h + b1_ref[...], 0.0)
    # fc2 + relu
    h = jnp.dot(h.astype(jnp.bfloat16), w2_ref[...],
                preferred_element_type=jnp.float32)
    h = jnp.maximum(h + b2_ref[...], 0.0)
    # fc3 (no activation); lane-dense (128-padded) bf16 output store.
    h = jnp.dot(h.astype(jnp.bfloat16), w3_ref[...],
                preferred_element_type=jnp.float32)
    o_ref[...] = (h + b3_ref[...]).astype(o_ref.dtype)


def mlp_forward(x, params, *, tm=None):
    """x: (B, input_size) f32. params: dict of (in, out) weights + (1, out) biases.
    Returns (B, output_size) f32."""
    w1, b1, w2, b2, w3, b3 = (params["w1"], params["b1"], params["w2"],
                              params["b2"], params["w3"], params["b3"])
    B, in_size = x.shape
    hid = w1.shape[1]
    out_size = w3.shape[1]

    # Contraction dim: pad only to a multiple of 16 (bf16 sublane of w1); no
    # 128-lane padding needed for a full-extent last dim.  Hidden/output dims
    # are lane dims of intermediates / the output store -> keep 128-padded.
    IN = _round_up(in_size, 16)
    H = _round_up(hid, 128)
    OUT = _round_up(out_size, 128)

    # Batch tile: multiples of 16 rows (bf16 packed sublane).  Small batches
    # run as a single grid step (no per-step pipeline overhead); big batches
    # use 512-row tiles to amortize step cost and lengthen the MXU M-stream.
    if tm is None:
        tm = _round_up(max(B, 1), 16) if B <= 512 else 512
    Bp = _round_up(B, tm)
    grid = (Bp // tm,)

    bf16, f32 = jnp.bfloat16, jnp.float32
    xp = _pad2d(x, Bp, IN, bf16)      # activations in bf16
    w1p = _pad2d(w1, IN, H, bf16)     # weights in bf16 (native MXU dtype)
    w2p = _pad2d(w2, H, H, bf16)
    w3p = _pad2d(w3, H, OUT, bf16)
    b1p = _pad2d(b1, 1, H, f32)       # biases stay f32 (added post-accumulation)
    b2p = _pad2d(b2, 1, H, f32)
    b3p = _pad2d(b3, 1, OUT, f32)

    # Weights/biases are resident across batch steps: constant block index,
    # single buffer (no pointless double-buffer VMEM).
    def resident(shape):
        return pl.BlockSpec(shape, lambda i: (0, 0),
                            pipeline_mode=pl.Buffered(1))

    # VMEM estimate: double-buffered x (bf16) + out (bf16), single-buffered bf16
    # weights + f32 biases, plus f32 hidden intermediates.  2x headroom, clamped
    # to a chip-aware ceiling (48 MiB on v7x, 96 MiB on v5e/v6e).
    resident_bytes = (IN * H + H * H + H * OUT) * 2 + (2 * H + OUT) * 4
    vmem_est = (2 * tm * IN * 2 + 2 * tm * OUT * 2
                + resident_bytes + 2 * tm * H * 4)
    ceiling = _vmem_ceiling_bytes()
    vmem_limit = int(min(max(2 * vmem_est, 16 * 1024 * 1024), ceiling))
    # TODO(synk): for hidden sizes whose resident bf16 weights approach ~half of
    # the VMEM ceiling (~4.8k on v7x, ~7k on v5e/v6e), switch to a K-tiled grid
    # with an f32 VMEM accumulator + pl.when init/finalize instead of residents.

    out = pl.pallas_call(
        mlp_kernel,
        out_shape=jax.ShapeDtypeStruct((Bp, OUT), bf16),   # bf16 writeback: halves output HBM bytes
        grid=grid,
        in_specs=[
            pl.BlockSpec((tm, IN), lambda i: (i, 0)),      # x: batch-tiled
            resident((IN, H)), resident((1, H)),           # w1, b1
            resident((H, H)), resident((1, H)),            # w2, b2
            resident((H, OUT)), resident((1, OUT)),        # w3, b3
        ],
        out_specs=pl.BlockSpec((tm, OUT), lambda i: (i, 0)),
        compiler_params=pltpu.CompilerParams(
            # TODO(synk): on v7x confirm in xprof that a multi-step batch grid
            # shards across both TensorCores; if not, use CORE_PARALLEL there.
            dimension_semantics=("parallel",),
            vmem_limit_bytes=vmem_limit),
    )(xp, w1p, b1p, w2p, b2p, w3p, b3p)

    # Slice away batch + lane padding; return f32 to match the module interface.
    return out[:B, :out_size].astype(f32)


def init_params(key, input_size, hidden_size, output_size):
    """Deterministic init mimicking nn.Linear default (uniform +/- 1/sqrt(fan_in)).
    Weights are stored pre-transposed as (in, out); master copy is f32, the
    forward pass casts to bf16."""
    ks = jax.random.split(key, 6)

    def linear(kw, kb, fan_in, fan_out):
        bound = 1.0 / jnp.sqrt(fan_in)
        w = jax.random.uniform(kw, (fan_in, fan_out), jnp.float32, -bound, bound)
        b = jax.random.uniform(kb, (1, fan_out), jnp.float32, -bound, bound)
        return w, b

    w1, b1 = linear(ks[0], ks[1], input_size, hidden_size)
    w2, b2 = linear(ks[2], ks[3], hidden_size, hidden_size)
    w3, b3 = linear(ks[4], ks[5], hidden_size, output_size)
    return dict(w1=w1, b1=b1, w2=w2, b2=b2, w3=w3, b3=b3)


def mlp_reference(x, p):
    """Pure-JAX reference with the same declared numerics as the kernel:
    bf16 matmul operands, f32 accumulation, f32 bias/ReLU, bf16 writeback."""
    bf = jnp.bfloat16
    h = jnp.dot(x.astype(bf), p["w1"].astype(bf),
                preferred_element_type=jnp.float32) + p["b1"]
    h = jnp.maximum(h, 0.0)
    h = jnp.dot(h.astype(bf), p["w2"].astype(bf),
                preferred_element_type=jnp.float32) + p["b2"]
    h = jnp.maximum(h, 0.0)
    out = jnp.dot(h.astype(bf), p["w3"].astype(bf),
                  preferred_element_type=jnp.float32) + p["b3"]
    return out.astype(bf).astype(jnp.float32)


if __name__ == "__main__":
    # batch=200 -> single grid step with TM=208 (16-row granularity, no step
    # overhead); input dim stays unpadded at 32; hidden/output pad to 128 lanes.
    batch, input_size, hidden_size, output_size = 200, 32, 64, 16

    key = jax.random.PRNGKey(0)
    kx, kp = jax.random.split(key)
    x = jax.random.normal(kx, (batch, input_size), jnp.float32)
    params = init_params(kp, input_size, hidden_size, output_size)

    out = jax.block_until_ready(mlp_forward(x, params))
    ref = mlp_reference(x, params)

    assert out.shape == (batch, output_size)
    assert jnp.allclose(out, ref, atol=1e-2, rtol=1e-2), \
        float(jnp.max(jnp.abs(out - ref)))

    print("KERNEL_OK")
</pallas_src>

<mosaic_0001>
module attributes {stable_mosaic.version = 11 : i64} {
  func.func @mlp_kernel(%arg0: i32, %arg1: memref<208x32xbf16, #tpu.memory_space<vmem>>, %arg2: memref<32x128xbf16, #tpu.memory_space<vmem>>, %arg3: memref<1x128xf32, #tpu.memory_space<vmem>>, %arg4: memref<128x128xbf16, #tpu.memory_space<vmem>>, %arg5: memref<1x128xf32, #tpu.memory_space<vmem>>, %arg6: memref<128x128xbf16, #tpu.memory_space<vmem>>, %arg7: memref<1x128xf32, #tpu.memory_space<vmem>>, %arg8: memref<208x128xbf16, #tpu.memory_space<vmem>>) attributes {dimension_semantics = [#tpu.dimension_semantics<parallel>], iteration_bounds = array<i64: 1>, scalar_prefetch = 0 : i64, scratch_operands = 0 : i64, tpu.core_type = #tpu.core_type<tc>, window_params = [{transform_indices = @transform_0, window_bounds = array<i64: 208, 32>}, {pipeline_mode = #tpu.pipeline_mode<synchronous>, transform_indices = @transform_1, window_bounds = array<i64: 32, 128>}, {pipeline_mode = #tpu.pipeline_mode<synchronous>, transform_indices = @transform_2, window_bounds = array<i64: 1, 128>}, {pipeline_mode = #tpu.pipeline_mode<synchronous>, transform_indices = @transform_3, window_bounds = array<i64: 128, 128>}, {pipeline_mode = #tpu.pipeline_mode<synchronous>, transform_indices = @transform_4, window_bounds = array<i64: 1, 128>}, {pipeline_mode = #tpu.pipeline_mode<synchronous>, transform_indices = @transform_5, window_bounds = array<i64: 128, 128>}, {pipeline_mode = #tpu.pipeline_mode<synchronous>, transform_indices = @transform_6, window_bounds = array<i64: 1, 128>}, {transform_indices = @transform_7, window_bounds = array<i64: 208, 128>}]} {
    %c0 = arith.constant 0 : index
    %c0_0 = arith.constant 0 : index
    %0 = vector.load %arg1[%c0, %c0_0] : memref<208x32xbf16, #tpu.memory_space<vmem>>, vector<208x32xbf16>
    %c0_1 = arith.constant 0 : index
    %c0_2 = arith.constant 0 : index
    %1 = vector.load %arg2[%c0_1, %c0_2] : memref<32x128xbf16, #tpu.memory_space<vmem>>, vector<32x128xbf16>
    %cst = arith.constant dense<0.000000e+00> : vector<208x128xf32>
    %2 = tpu.matmul %0, %1, %cst {dimension_numbers = #tpu.dot_dimension_numbers<[1], [0], [0], [1], [0, 0, 1, 1], [], []>} : vector<208x32xbf16>, vector<32x128xbf16>, vector<208x128xf32> -> vector<208x128xf32>
    %c0_3 = arith.constant 0 : index
    %c0_4 = arith.constant 0 : index
    %3 = vector.load %arg3[%c0_3, %c0_4] : memref<1x128xf32, #tpu.memory_space<vmem>>, vector<1x128xf32>
    %4 = vector.broadcast %3 : vector<1x128xf32> to vector<208x128xf32>
    %5 = arith.addf %2, %4 : vector<208x128xf32>
    %cst_5 = arith.constant 0.000000e+00 : f32
    %6 = vector.broadcast %cst_5 : f32 to vector<208x128xf32>
    %7 = arith.maximumf %5, %6 : vector<208x128xf32>
    %8 = arith.truncf %7 : vector<208x128xf32> to vector<208x128xbf16>
    %c0_6 = arith.constant 0 : index
    %c0_7 = arith.constant 0 : index
    %9 = vector.load %arg4[%c0_6, %c0_7] : memref<128x128xbf16, #tpu.memory_space<vmem>>, vector<128x128xbf16>
    %cst_8 = arith.constant dense<0.000000e+00> : vector<208x128xf32>
    %10 = tpu.matmul %8, %9, %cst_8 {dimension_numbers = #tpu.dot_dimension_numbers<[1], [0], [0], [1], [0, 0, 1, 1], [], []>} : vector<208x128xbf16>, vector<128x128xbf16>, vector<208x128xf32> -> vector<208x128xf32>
    %c0_9 = arith.constant 0 : index
    %c0_10 = arith.constant 0 : index
    %11 = vector.load %arg5[%c0_9, %c0_10] : memref<1x128xf32, #tpu.memory_space<vmem>>, vector<1x128xf32>
    %12 = vector.broadcast %11 : vector<1x128xf32> to vector<208x128xf32>
    %13 = arith.addf %10, %12 : vector<208x128xf32>
    %cst_11 = arith.constant 0.000000e+00 : f32
    %14 = vector.broadcast %cst_11 : f32 to vector<208x128xf32>
    %15 = arith.maximumf %13, %14 : vector<208x128xf32>
    %16 = arith.truncf %15 : vector<208x128xf32> to vector<208x128xbf16>
    %c0_12 = arith.constant 0 : index
    %c0_13 = arith.constant 0 : index
    %17 = vector.load %arg6[%c0_12, %c0_13] : memref<128x128xbf16, #tpu.memory_space<vmem>>, vector<128x128xbf16>
    %cst_14 = arith.constant dense<0.000000e+00> : vector<208x128xf32>
    %18 = tpu.matmul %16, %17, %cst_14 {dimension_numbers = #tpu.dot_dimension_numbers<[1], [0], [0], [1], [0, 0, 1, 1], [], []>} : vector<208x128xbf16>, vector<128x128xbf16>, vector<208x128xf32> -> vector<208x128xf32>
    %c0_15 = arith.constant 0 : index
    %c0_16 = arith.constant 0 : index
    %19 = vector.load %arg7[%c0_15, %c0_16] : memref<1x128xf32, #tpu.memory_space<vmem>>, vector<1x128xf32>
    %20 = vector.broadcast %19 : vector<1x128xf32> to vector<208x128xf32>
    %21 = arith.addf %18, %20 : vector<208x128xf32>
    %22 = arith.truncf %21 : vector<208x128xf32> to vector<208x128xbf16>
    %c0_17 = arith.constant 0 : index
    %c0_18 = arith.constant 0 : index
    %23 = vector.load %arg8[%c0_17, %c0_18] : memref<208x128xbf16, #tpu.memory_space<vmem>>, vector<208x128xbf16>
    tpu.vector_store %arg8[%c0_17, %c0_18], %22 {strides = array<i32>} : memref<208x128xbf16, #tpu.memory_space<vmem>>, vector<208x128xbf16>,
    return
  }
  func.func @transform_0(%arg0: i32) -> (i32, i32) {
    %c0_i32 = arith.constant 0 : i32
    %c0_i32_0 = arith.constant 0 : i32
    return %arg0, %c0_i32 : i32, i32
  }
  func.func @transform_1(%arg0: i32) -> (i32, i32) {
    %c0_i32 = arith.constant 0 : i32
    %c0_i32_0 = arith.constant 0 : i32
    %c0_i32_1 = arith.constant 0 : i32
    return %c0_i32, %c0_i32_0 : i32, i32
  }
  func.func @transform_2(%arg0: i32) -> (i32, i32) {
    %c0_i32 = arith.constant 0 : i32
    %c0_i32_0 = arith.constant 0 : i32
    %c0_i32_1 = arith.constant 0 : i32
    return %c0_i32, %c0_i32_0 : i32, i32
  }
  func.func @transform_3(%arg0: i32) -> (i32, i32) {
    %c0_i32 = arith.constant 0 : i32
    %c0_i32_0 = arith.constant 0 : i32
    %c0_i32_1 = arith.constant 0 : i32
    return %c0_i32, %c0_i32_0 : i32, i32
  }
  func.func @transform_4(%arg0: i32) -> (i32, i32) {
    %c0_i32 = arith.constant 0 : i32
    %c0_i32_0 = arith.constant 0 : i32
    %c0_i32_1 = arith.constant 0 : i32
    return %c0_i32, %c0_i32_0 : i32, i32
  }
  func.func @transform_5(%arg0: i32) -> (i32, i32) {
    %c0_i32 = arith.constant 0 : i32
    %c0_i32_0 = arith.constant 0 : i32
    %c0_i32_1 = arith.constant 0 : i32
    return %c0_i32, %c0_i32_0 : i32, i32
  }
  func.func @transform_6(%arg0: i32) -> (i32, i32) {
    %c0_i32 = arith.constant 0 : i32
    %c0_i32_0 = arith.constant 0 : i32
    %c0_i32_1 = arith.constant 0 : i32
    return %c0_i32, %c0_i32_0 : i32, i32
  }
  func.func @transform_7(%arg0: i32) -> (i32, i32) {
    %c0_i32 = arith.constant 0 : i32
    %c0_i32_0 = arith.constant 0 : i32
    return %arg0, %c0_i32 : i32, i32
  }
}

</mosaic_0001>

<llo_original>
// kernel: tpu_custom_call.1
$region0: #{tpu_custom_call.1}
  #allocation0 [shape = 'u32[]', space=smem, size = 0x4, offset = 0x4, fixed_abs, tag = 'smem constant byte address 0x4 - core index']
  #allocation1 [shape = 'u32[72,128]{1,0:T(1,128)}', space=vmem, size = 0x9000, scoped, tag = 'internal scratch']
  %s0 = inlined_call_operand.vmem [shape: bf16[208,32], index: 0, kind: input, shape index: {}]
  %s1 = inlined_call_operand.hbm [shape: bf16[32,128], index: 1, kind: input, shape index: {}]
  %s2 = inlined_call_operand.vmem [shape: f32[1,128], index: 2, kind: input, shape index: {}]
  %s3 = inlined_call_operand.vmem [shape: bf16[128,128], index: 3, kind: input, shape index: {}]
  %s4 = inlined_call_operand.vmem [shape: f32[1,128], index: 4, kind: input, shape index: {}]
  %s5 = inlined_call_operand.vmem [shape: bf16[128,128], index: 5, kind: input, shape index: {}]
  %s6 = inlined_call_operand.vmem [shape: f32[1,128], index: 6, kind: input, shape index: {}]
  %s7 = inlined_call_operand.hbm [shape: bf16[208,128], index: 7, kind: output, shape index: {}]
  %s8 = sld [smem:[#allocation0]]
  $region42: #{tpu_custom_call.1} parent=0
    _
  %s10 = ssub.s32 1, %s8
  %s11 = scalar_select 0, %s10, %s8
  $region1: #{tpu_custom_call.1} parent=0
    #allocation2 [shape = 'u8[8192]{0}', space=vmem, size = 0x2000, scoped, tag = 'input window, operand 1, single buffered']
    #allocation3 [shape = 's32[1]{0}', space=sflag, size = 0x4, scoped, tag = 'scoped memory for tpu_custom_call.1']
    #allocation4 [shape = 's32[1]{0}', space=sflag, size = 0x4, scoped, tag = 'scoped memory for tpu_custom_call.1']
    #allocation5 [shape = 'u8[53248]{0}', space=vmem, size = 0xd000, scoped, tag = 'output window, operand 0, single buffered']
    %12 = vsyncpa [#allocation3], 0
    %13 = vsyncpa [#allocation4], 0
    // Predicated region
    $region2: #{tpu_custom_call.1} parent=1 // pred_check
      _
    $region3: #{tpu_custom_call.1} parent=1 // pred_check_branch
      %15 = sbr.rel (0) target = $region5
    $region4: #{tpu_custom_call.1} parent=1 // pred_region
      _
    $region5: #{tpu_custom_call.1} parent=1 // pred_fallthru
      _
    // Predicated region
    $region6: #{tpu_custom_call.1} parent=1 // pred_check
      _
    $region7: #{tpu_custom_call.1} parent=1 // pred_check_branch
      %17 = sbr.rel (0) target = $region9
    $region8: #{tpu_custom_call.1} parent=1 // pred_region
      %19 = vsyncadd [#allocation3], 0
      %s20 = sshll.u32 %s1, 4
      %s21 = int_to_ptr.hbm [resolvable:$true] %s20
      %s22 = sshll.u32 [#allocation2], 4
      %s23 = int_to_ptr.vmem [resolvable:$true] %s22
      %28 = dma.hbm_to_vmem [thread:$0]  %s21, 256, %s23, [#allocation3], 64, 64, 4
    $region9: #{tpu_custom_call.1} parent=1 // pred_fallthru
      _
    // Predicated region
    $region10: #{tpu_custom_call.1} parent=1 // pred_check
      _
    $region11: #{tpu_custom_call.1} parent=1 // pred_check_branch
      %30 = sbr.rel (0) target = $region13
    $region12: #{tpu_custom_call.1} parent=1 // pred_region
      _
    $region13: #{tpu_custom_call.1} parent=1 // pred_fallthru
      _
    // Predicated region
    $region14: #{tpu_custom_call.1} parent=1 // pred_check
      _
    $region15: #{tpu_custom_call.1} parent=1 // pred_check_branch
      %32 = sbr.rel (0) target = $region17
    $region16: #{tpu_custom_call.1} parent=1 // pred_region
      _
    $region17: #{tpu_custom_call.1} parent=1 // pred_fallthru
      _
    // Predicated region
    $region18: #{tpu_custom_call.1} parent=1 // pred_check
      _
    $region19: #{tpu_custom_call.1} parent=1 // pred_check_branch
      %34 = sbr.rel (0) target = $region21
    $region20: #{tpu_custom_call.1} parent=1 // pred_region
      _
    $region21: #{tpu_custom_call.1} parent=1 // pred_fallthru
      _
    // Predicated region
    $region22: #{tpu_custom_call.1} parent=1 // pred_check
      _
    $region23: #{tpu_custom_call.1} parent=1 // pred_check_branch
      %36 = sbr.rel (0) target = $region25
    $region24: #{tpu_custom_call.1} parent=1 // pred_region
      _
    $region25: #{tpu_custom_call.1} parent=1 // pred_fallthru
      _
    // Predicated region
    $region26: #{tpu_custom_call.1} parent=1 // pred_check
      _
    $region27: #{tpu_custom_call.1} parent=1 // pred_check_branch
      %38 = sbr.rel (0) target = $region29
    $region28: #{tpu_custom_call.1} parent=1 // pred_region
      _
    $region29: #{tpu_custom_call.1} parent=1 // pred_fallthru
      _
    // Predicated region
    $region30: #{tpu_custom_call.1} parent=1 // pred_check
      _
    $region31: #{tpu_custom_call.1} parent=1 // pred_check_branch
      %40 = sbr.rel (0) target = $region33
    $region32: #{tpu_custom_call.1} parent=1 // pred_region
      %42 = dma.done [#allocation3], 256
    $region33: #{tpu_custom_call.1} parent=1 // pred_fallthru
      _
    %v44 = vld [vmem:[%s0] sm:$0xf]
    %v45 = vld [vmem:[%s0 + $0x4] sm:$0xf]
    %v46 = vld [vmem:[%s0 + $0x8] sm:$0xf]
    %v47 = vld [vmem:[%s0 + $0xc] sm:$0xf]
    %v48 = vld [vmem:[%s0 + $0x10] sm:$0xf]
    %v49 = vld [vmem:[%s0 + $0x14] sm:$0xf]
    %v50 = vld [vmem:[%s0 + $0x18] sm:$0xf]
    %v51 = vld [vmem:[%s0 + $0x1c] sm:$0xf]
    %v52 = vld [vmem:[%s0 + $0x20] sm:$0xf]
    %v53 = vld [vmem:[%s0 + $0x24] sm:$0xf]
    %v54 = vld [vmem:[%s0 + $0x28] sm:$0xf]
    %v55 = vld [vmem:[%s0 + $0x2c] sm:$0xf]
    %v56 = vld [vmem:[%s0 + $0x30] sm:$0xf]
    %v57 = vld [vmem:[%s0 + $0x34] sm:$0xf]
    %v58 = vld [vmem:[%s0 + $0x38] sm:$0xf]
    %v59 = vld [vmem:[%s0 + $0x3c] sm:$0xf]
    %v60 = vld [vmem:[%s0 + $0x40] sm:$0xf]
    %v61 = vld [vmem:[%s0 + $0x44] sm:$0xf]
    %v62 = vld [vmem:[%s0 + $0x48] sm:$0xf]
    %v63 = vld [vmem:[%s0 + $0x4c] sm:$0xf]
    %v64 = vld [vmem:[%s0 + $0x50] sm:$0xf]
    %v65 = vld [vmem:[%s0 + $0x54] sm:$0xf]
    %v66 = vld [vmem:[%s0 + $0x58] sm:$0xf]
    %v67 = vld [vmem:[%s0 + $0x5c] sm:$0xf]
    %v68 = vld [vmem:[%s0 + $0x60] sm:$0xf]
    %v69 = vld [vmem:[%s0 + $0x64] sm:$0xf]
    %v70 = vld [vmem:[#allocation2] sm:$0xf]
    %v71 = vld [vmem:[#allocation2 + $0x4] sm:$0xf]
    %v72 = vld [vmem:[#allocation2 + $0x8] sm:$0xf]
    %v73 = vld [vmem:[#allocation2 + $0xc] sm:$0xf]
    %v74 = vld [vmem:[%s2] sm:$0x1]
    %v76 = vperm.slane %v74, 0
    %v104 = vunpack.c.l.b16 %v44
    %v105 = vunpack.c.l.b16 %v45
    %v106 = vunpack.c.l.b16 %v46
    %v107 = vunpack.c.l.b16 %v47
    %v108 = vunpack.c.l.b16 %v48
    %v109 = vunpack.c.l.b16 %v49
    %v110 = vunpack.c.l.b16 %v50
    %v111 = vunpack.c.l.b16 %v51
    %v112 = vunpack.c.l.b16 %v52
    %v113 = vunpack.c.l.b16 %v53
    %v114 = vunpack.c.l.b16 %v54
    %v115 = vunpack.c.l.b16 %v55
    %v116 = vunpack.c.l.b16 %v56
    %v117 = vunpack.c.l.b16 %v57
    %v118 = vunpack.c.l.b16 %v58
    %v119 = vunpack.c.l.b16 %v59
    %v120 = vunpack.c.l.b16 %v60
    %v121 = vunpack.c.l.b16 %v61
    %v122 = vunpack.c.l.b16 %v62
    %v123 = vunpack.c.l.b16 %v63
    %v124 = vunpack.c.l.b16 %v64
    %v125 = vunpack.c.l.b16 %v65
    %v126 = vunpack.c.l.b16 %v66
    %v127 = vunpack.c.l.b16 %v67
    %v128 = vunpack.c.l.b16 %v68
    %v129 = vunpack.c.l.b16 %v69
    %v130 = vpack.c.b16 %v105, %v104
    %v131 = vpack.c.b16 %v107, %v106
    %v132 = vpack.c.b16 %v109, %v108
    %v133 = vpack.c.b16 %v111, %v110
    %v134 = vpack.c.b16 %v113, %v112
    %v135 = vpack.c.b16 %v115, %v114
    %v136 = vpack.c.b16 %v117, %v116
    %v137 = vpack.c.b16 %v119, %v118
    %v138 = vpack.c.b16 %v121, %v120
    %v139 = vpack.c.b16 %v123, %v122
    %v140 = vpack.c.b16 %v125, %v124
    %v141 = vpack.c.b16 %v127, %v126
    %v142 = vpack.c.b16 %v129, %v128
    %v147 = vunpack.c.l.b16 %v70
    %v148 = vunpack.c.l.b16 %v71
    %v149 = vunpack.c.l.b16 %v72
    %v150 = vunpack.c.l.b16 %v73
    %v151 = vpack.c.b16 %v148, %v147
    %v152 = vpack.c.b16 %v150, %v149
    %vm155 = vcmask 261120
    %v157 = vsel %vm155, %v130, 0
    %v160 = vsel %vm155, %v131, 0
    %v163 = vsel %vm155, %v132, 0
    %v166 = vsel %vm155, %v133, 0
    %v169 = vsel %vm155, %v134, 0
    %v172 = vsel %vm155, %v135, 0
    %v175 = vsel %vm155, %v136, 0
    %v178 = vsel %vm155, %v137, 0
    %v181 = vsel %vm155, %v138, 0
    %v184 = vsel %vm155, %v139, 0
    %v187 = vsel %vm155, %v140, 0
    %v190 = vsel %vm155, %v141, 0
    %v193 = vsel %vm155, %v142, 0
    %195 = vmatpush.bf16.msra.mxu0 0
    %196 = vmatpush.bf16.msra.mxu0 0
    %197 = vmatpush.bf16.msra.mxu0 0
    %198 = vmatpush.bf16.msra.mxu0 0
    %199 = vmatpush.bf16.msra.mxu0 0
    %200 = vmatpush.bf16.msra.mxu0 0
    %201 = vmatpush.bf16.msra.mxu0 %v152
    %202 = vmatpush.bf16.msra.mxu0 %v151
    %203 = vmatmul.bf16.gmra.mxu0 %v157
    %v204 = vpop.f32.mrf.mxu0
    %v205 = vadd.f32 %v76, %v204
    %v206 = vpop.f32.mrf.mxu0
    %v207 = vadd.f32 %v76, %v206
    %208 = vmatmul.bf16.gmra.mxu0 %v160
    %v209 = vpop.f32.mrf.mxu0
    %v210 = vadd.f32 %v76, %v209
    %v211 = vpop.f32.mrf.mxu0
    %v212 = vadd.f32 %v76, %v211
    %213 = vmatmul.bf16.gmra.mxu0 %v163
    %v214 = vpop.f32.mrf.mxu0
    %v215 = vadd.f32 %v76, %v214
    %v216 = vpop.f32.mrf.mxu0
    %v217 = vadd.f32 %v76, %v216
    %218 = vmatmul.bf16.gmra.mxu0 %v166
    %v219 = vpop.f32.mrf.mxu0
    %v220 = vadd.f32 %v76, %v219
    %v221 = vpop.f32.mrf.mxu0
    %v222 = vadd.f32 %v76, %v221
    %223 = vmatmul.bf16.gmra.mxu0 %v169
    %v224 = vpop.f32.mrf.mxu0
    %v225 = vadd.f32 %v76, %v224
    %v226 = vpop.f32.mrf.mxu0
    %v227 = vadd.f32 %v76, %v226
    %228 = vmatmul.bf16.gmra.mxu0 %v172
    %v229 = vpop.f32.mrf.mxu0
    %v230 = vadd.f32 %v76, %v229
    %v231 = vpop.f32.mrf.mxu0
    %v232 = vadd.f32 %v76, %v231
    %233 = vmatmul.bf16.gmra.mxu0 %v175
    %v234 = vpop.f32.mrf.mxu0
    %v235 = vadd.f32 %v76, %v234
    %v236 = vpop.f32.mrf.mxu0
    %v237 = vadd.f32 %v76, %v236
    %238 = vmatmul.bf16.gmra.mxu0 %v178
    %v239 = vpop.f32.mrf.mxu0
    %v240 = vadd.f32 %v76, %v239
    %v241 = vpop.f32.mrf.mxu0
    %v242 = vadd.f32 %v76, %v241
    %243 = vmatmul.bf16.gmra.mxu0 %v181
    %v244 = vpop.f32.mrf.mxu0
    %v245 = vadd.f32 %v76, %v244
    %v246 = vpop.f32.mrf.mxu0
    %v247 = vadd.f32 %v76, %v246
    %248 = vmatmul.bf16.gmra.mxu0 %v184
    %v249 = vpop.f32.mrf.mxu0
    %v250 = vadd.f32 %v76, %v249
    %v251 = vpop.f32.mrf.mxu0
    %v252 = vadd.f32 %v76, %v251
    %253 = vmatmul.bf16.gmra.mxu0 %v187
    %v254 = vpop.f32.mrf.mxu0
    %v255 = vadd.f32 %v76, %v254
    %v256 = vpop.f32.mrf.mxu0
    %v257 = vadd.f32 %v76, %v256
    %258 = vmatmul.bf16.gmra.mxu0 %v190
    %v259 = vpop.f32.mrf.mxu0
    %v260 = vadd.f32 %v76, %v259
    %v261 = vpop.f32.mrf.mxu0
    %v262 = vadd.f32 %v76, %v261
    %263 = vmatmul.bf16.gmra.mxu0 %v193
    %v264 = vpop.f32.mrf.mxu0
    %v265 = vadd.f32 %v76, %v264
    %v266 = vpop.f32.mrf.mxu0
    %v267 = vadd.f32 %v76, %v266
    %268 = vdwg.mxu0
    %v269 = vmax.f32 %v205, 0.0
    %v270 = vmax.f32 %v207, 0.0
    %v271 = vmax.f32 %v210, 0.0
    %v272 = vmax.f32 %v212, 0.0
    %v273 = vmax.f32 %v215, 0.0
    %v274 = vmax.f32 %v217, 0.0
    %v275 = vmax.f32 %v220, 0.0
    %v276 = vmax.f32 %v222, 0.0
    %v277 = vmax.f32 %v225, 0.0
    %v278 = vmax.f32 %v227, 0.0
    %v279 = vmax.f32 %v230, 0.0
    %v280 = vmax.f32 %v232, 0.0
    %v281 = vmax.f32 %v235, 0.0
    %v282 = vmax.f32 %v237, 0.0
    %v283 = vmax.f32 %v240, 0.0
    %v284 = vmax.f32 %v242, 0.0
    %v285 = vmax.f32 %v245, 0.0
    %v286 = vmax.f32 %v247, 0.0
    %v287 = vmax.f32 %v250, 0.0
    %v288 = vmax.f32 %v252, 0.0
    %v289 = vmax.f32 %v255, 0.0
    %v290 = vmax.f32 %v257, 0.0
    %v291 = vmax.f32 %v260, 0.0
    %v292 = vmax.f32 %v262, 0.0
    %v293 = vmax.f32 %v265, 0.0
    %v294 = vmax.f32 %v267, 0.0
    %v295 = vpack.c.bf16 %v270, %v269
    %v296 = vpack.c.bf16 %v272, %v271
    %v297 = vpack.c.bf16 %v274, %v273
    %v298 = vpack.c.bf16 %v276, %v275
    %v299 = vpack.c.bf16 %v278, %v277
    %v300 = vpack.c.bf16 %v280, %v279
    %v301 = vpack.c.bf16 %v282, %v281
    %v302 = vpack.c.bf16 %v284, %v283
    %v303 = vpack.c.bf16 %v286, %v285
    %v304 = vpack.c.bf16 %v288, %v287
    %v305 = vpack.c.bf16 %v290, %v289
    %v306 = vpack.c.bf16 %v292, %v291
    %v307 = vpack.c.bf16 %v294, %v293
    %v308 = vld [vmem:[%s3] sm:$0xf]
    %v309 = vld [vmem:[%s3 + $0x4] sm:$0xf]
    %v310 = vld [vmem:[%s3 + $0x8] sm:$0xf]
    %v311 = vld [vmem:[%s3 + $0xc] sm:$0xf]
    %v312 = vld [vmem:[%s3 + $0x10] sm:$0xf]
    %v313 = vld [vmem:[%s3 + $0x14] sm:$0xf]
    %v314 = vld [vmem:[%s3 + $0x18] sm:$0xf]
    %v315 = vld [vmem:[%s3 + $0x1c] sm:$0xf]
    %v316 = vld [vmem:[%s3 + $0x20] sm:$0xf]
    %v317 = vld [vmem:[%s3 + $0x24] sm:$0xf]
    %v318 = vld [vmem:[%s3 + $0x28] sm:$0xf]
    %v319 = vld [vmem:[%s3 + $0x2c] sm:$0xf]
    %v320 = vld [vmem:[%s3 + $0x30] sm:$0xf]
    %v321 = vld [vmem:[%s3 + $0x34] sm:$0xf]
    %v322 = vld [vmem:[%s3 + $0x38] sm:$0xf]
    %v323 = vld [vmem:[%s3 + $0x3c] sm:$0xf]
    %v324 = vld [vmem:[%s4] sm:$0x1]
    %v326 = vperm.slane %v324, 0
    %v344 = vunpack.c.l.b16 %v308
    %v345 = vunpack.c.l.b16 %v309
    %v346 = vunpack.c.l.b16 %v310
    %v347 = vunpack.c.l.b16 %v311
    %v348 = vunpack.c.l.b16 %v312
    %v349 = vunpack.c.l.b16 %v313
    %v350 = vunpack.c.l.b16 %v314
    %v351 = vunpack.c.l.b16 %v315
    %v352 = vunpack.c.l.b16 %v316
    %v353 = vunpack.c.l.b16 %v317
    %v354 = vunpack.c.l.b16 %v318
    %v355 = vunpack.c.l.b16 %v319
    %v356 = vunpack.c.l.b16 %v320
    %v357 = vunpack.c.l.b16 %v321
    %v358 = vunpack.c.l.b16 %v322
    %v359 = vunpack.c.l.b16 %v323
    %v360 = vpack.c.b16 %v345, %v344
    %v361 = vpack.c.b16 %v347, %v346
    %v362 = vpack.c.b16 %v349, %v348
    %v363 = vpack.c.b16 %v351, %v350
    %v364 = vpack.c.b16 %v353, %v352
    %v365 = vpack.c.b16 %v355, %v354
    %v366 = vpack.c.b16 %v357, %v356
    %v367 = vpack.c.b16 %v359, %v358
    %376 = vmatpush.bf16.msra.mxu0 %v367
    %377 = vmatpush.bf16.msra.mxu0 %v366
    %378 = vmatpush.bf16.msra.mxu0 %v365
    %379 = vmatpush.bf16.msra.mxu0 %v364
    %380 = vmatpush.bf16.msra.mxu0 %v363
    %381 = vmatpush.bf16.msra.mxu0 %v362
    %382 = vmatpush.bf16.msra.mxu0 %v361
    %383 = vmatpush.bf16.msra.mxu0 %v360
    %384 = vmatmul.bf16.gmra.mxu0 %v295
    %v385 = vpop.f32.mrf.mxu0
    %v386 = vadd.f32 %v326, %v385
    %v387 = vpop.f32.mrf.mxu0
    %v388 = vadd.f32 %v326, %v387
    %389 = vmatmul.bf16.gmra.mxu0 %v296
    %v390 = vpop.f32.mrf.mxu0
    %v391 = vadd.f32 %v326, %v390
    %v392 = vpop.f32.mrf.mxu0
    %v393 = vadd.f32 %v326, %v392
    %394 = vmatmul.bf16.gmra.mxu0 %v297
    %v395 = vpop.f32.mrf.mxu0
    %v396 = vadd.f32 %v326, %v395
    %v397 = vpop.f32.mrf.mxu0
    %v398 = vadd.f32 %v326, %v397
    %399 = vmatmul.bf16.gmra.mxu0 %v298
    %v400 = vpop.f32.mrf.mxu0
    %v401 = vadd.f32 %v326, %v400
    %v402 = vpop.f32.mrf.mxu0
    %v403 = vadd.f32 %v326, %v402
    %404 = vmatmul.bf16.gmra.mxu0 %v299
    %v405 = vpop.f32.mrf.mxu0
    %v406 = vadd.f32 %v326, %v405
    %v407 = vpop.f32.mrf.mxu0
    %v408 = vadd.f32 %v326, %v407
    %409 = vmatmul.bf16.gmra.mxu0 %v300
    %v410 = vpop.f32.mrf.mxu0
    %v411 = vadd.f32 %v326, %v410
    %v412 = vpop.f32.mrf.mxu0
    %v413 = vadd.f32 %v326, %v412
    %414 = vmatmul.bf16.gmra.mxu0 %v301
    %v415 = vpop.f32.mrf.mxu0
    %v416 = vadd.f32 %v326, %v415
    %v417 = vpop.f32.mrf.mxu0
    %v418 = vadd.f32 %v326, %v417
    %419 = vmatmul.bf16.gmra.mxu0 %v302
    %v420 = vpop.f32.mrf.mxu0
    %v421 = vadd.f32 %v326, %v420
    %v422 = vpop.f32.mrf.mxu0
    %v423 = vadd.f32 %v326, %v422
    %424 = vmatmul.bf16.gmra.mxu0 %v303
    %v425 = vpop.f32.mrf.mxu0
    %v426 = vadd.f32 %v326, %v425
    %v427 = vpop.f32.mrf.mxu0
    %v428 = vadd.f32 %v326, %v427
    %429 = vmatmul.bf16.gmra.mxu0 %v304
    %v430 = vpop.f32.mrf.mxu0
    %v431 = vadd.f32 %v326, %v430
    %v432 = vpop.f32.mrf.mxu0
    %v433 = vadd.f32 %v326, %v432
    %434 = vmatmul.bf16.gmra.mxu0 %v305
    %v435 = vpop.f32.mrf.mxu0
    %v436 = vadd.f32 %v326, %v435
    %v437 = vpop.f32.mrf.mxu0
    %v438 = vadd.f32 %v326, %v437
    %439 = vmatmul.bf16.gmra.mxu0 %v306
    %v440 = vpop.f32.mrf.mxu0
    %v441 = vadd.f32 %v326, %v440
    %v442 = vpop.f32.mrf.mxu0
    %v443 = vadd.f32 %v326, %v442
    %444 = vmatmul.bf16.gmra.mxu0 %v307
    %v445 = vpop.f32.mrf.mxu0
    %v446 = vadd.f32 %v326, %v445
    %v447 = vpop.f32.mrf.mxu0
    %v448 = vadd.f32 %v326, %v447
    %449 = vdwg.mxu0
    %v450 = vmax.f32 %v386, 0.0
    %v451 = vmax.f32 %v388, 0.0
    %v452 = vmax.f32 %v391, 0.0
    %v453 = vmax.f32 %v393, 0.0
    %v454 = vmax.f32 %v396, 0.0
    %v455 = vmax.f32 %v398, 0.0
    %v456 = vmax.f32 %v401, 0.0
    %v457 = vmax.f32 %v403, 0.0
    %v458 = vmax.f32 %v406, 0.0
    %v459 = vmax.f32 %v408, 0.0
    %v460 = vmax.f32 %v411, 0.0
    %v461 = vmax.f32 %v413, 0.0
    %v462 = vmax.f32 %v416, 0.0
    %v463 = vmax.f32 %v418, 0.0
    %v464 = vmax.f32 %v421, 0.0
    %v465 = vmax.f32 %v423, 0.0
    %v466 = vmax.f32 %v426, 0.0
    %v467 = vmax.f32 %v428, 0.0
    %v468 = vmax.f32 %v431, 0.0
    %v469 = vmax.f32 %v433, 0.0
    %v470 = vmax.f32 %v436, 0.0
    %v471 = vmax.f32 %v438, 0.0
    %v472 = vmax.f32 %v441, 0.0
    %v473 = vmax.f32 %v443, 0.0
    %v474 = vmax.f32 %v446, 0.0
    %v475 = vmax.f32 %v448, 0.0
    %v476 = vpack.c.bf16 %v451, %v450
    %v477 = vpack.c.bf16 %v453, %v452
    %v478 = vpack.c.bf16 %v455, %v454
    %v479 = vpack.c.bf16 %v457, %v456
    %v480 = vpack.c.bf16 %v459, %v458
    %v481 = vpack.c.bf16 %v461, %v460
    %v482 = vpack.c.bf16 %v463, %v462
    %v483 = vpack.c.bf16 %v465, %v464
    %v484 = vpack.c.bf16 %v467, %v466
    %v485 = vpack.c.bf16 %v469, %v468
    %v486 = vpack.c.bf16 %v471, %v470
    %v487 = vpack.c.bf16 %v473, %v472
    %v488 = vpack.c.bf16 %v475, %v474
    %v489 = vld [vmem:[%s5] sm:$0xf]
    %v490 = vld [vmem:[%s5 + $0x4] sm:$0xf]
    %v491 = vld [vmem:[%s5 + $0x8] sm:$0xf]
    %v492 = vld [vmem:[%s5 + $0xc] sm:$0xf]
    %v493 = vld [vmem:[%s5 + $0x10] sm:$0xf]
    %v494 = vld [vmem:[%s5 + $0x14] sm:$0xf]
    %v495 = vld [vmem:[%s5 + $0x18] sm:$0xf]
    %v496 = vld [vmem:[%s5 + $0x1c] sm:$0xf]
    %v497 = vld [vmem:[%s5 + $0x20] sm:$0xf]
    %v498 = vld [vmem:[%s5 + $0x24] sm:$0xf]
    %v499 = vld [vmem:[%s5 + $0x28] sm:$0xf]
    %v500 = vld [vmem:[%s5 + $0x2c] sm:$0xf]
    %v501 = vld [vmem:[%s5 + $0x30] sm:$0xf]
    %v502 = vld [vmem:[%s5 + $0x34] sm:$0xf]
    %v503 = vld [vmem:[%s5 + $0x38] sm:$0xf]
    %v504 = vld [vmem:[%s5 + $0x3c] sm:$0xf]
    %v505 = vld [vmem:[%s6] sm:$0x1]
    %v507 = vperm.slane %v505, 0
    %v525 = vunpack.c.l.b16 %v489
    %v526 = vunpack.c.l.b16 %v490
    %v527 = vunpack.c.l.b16 %v491
    %v528 = vunpack.c.l.b16 %v492
    %v529 = vunpack.c.l.b16 %v493
    %v530 = vunpack.c.l.b16 %v494
    %v531 = vunpack.c.l.b16 %v495
    %v532 = vunpack.c.l.b16 %v496
    %v533 = vunpack.c.l.b16 %v497
    %v534 = vunpack.c.l.b16 %v498
    %v535 = vunpack.c.l.b16 %v499
    %v536 = vunpack.c.l.b16 %v500
    %v537 = vunpack.c.l.b16 %v501
    %v538 = vunpack.c.l.b16 %v502
    %v539 = vunpack.c.l.b16 %v503
    %v540 = vunpack.c.l.b16 %v504
    %v541 = vpack.c.b16 %v526, %v525
    %v542 = vpack.c.b16 %v528, %v527
    %v543 = vpack.c.b16 %v530, %v529
    %v544 = vpack.c.b16 %v532, %v531
    %v545 = vpack.c.b16 %v534, %v533
    %v546 = vpack.c.b16 %v536, %v535
    %v547 = vpack.c.b16 %v538, %v537
    %v548 = vpack.c.b16 %v540, %v539
    %557 = vmatpush.bf16.msra.mxu0 %v548
    %558 = vmatpush.bf16.msra.mxu0 %v547
    %559 = vmatpush.bf16.msra.mxu0 %v546
    %560 = vmatpush.bf16.msra.mxu0 %v545
    %561 = vmatpush.bf16.msra.mxu0 %v544
    %562 = vmatpush.bf16.msra.mxu0 %v543
    %563 = vmatpush.bf16.msra.mxu0 %v542
    %564 = vmatpush.bf16.msra.mxu0 %v541
    %565 = vmatmul.bf16.gmra.mxu0 %v476
    %v566 = vpop.f32.mrf.mxu0
    %v567 = vadd.f32 %v507, %v566
    %v568 = vpop.f32.mrf.mxu0
    %v569 = vadd.f32 %v507, %v568
    %570 = vmatmul.bf16.gmra.mxu0 %v477
    %v571 = vpop.f32.mrf.mxu0
    %v572 = vadd.f32 %v507, %v571
    %v573 = vpop.f32.mrf.mxu0
    %v574 = vadd.f32 %v507, %v573
    %575 = vmatmul.bf16.gmra.mxu0 %v478
    %v576 = vpop.f32.mrf.mxu0
    %v577 = vadd.f32 %v507, %v576
    %v578 = vpop.f32.mrf.mxu0
    %v579 = vadd.f32 %v507, %v578
    %580 = vmatmul.bf16.gmra.mxu0 %v479
    %v581 = vpop.f32.mrf.mxu0
    %v582 = vadd.f32 %v507, %v581
    %v583 = vpop.f32.mrf.mxu0
    %v584 = vadd.f32 %v507, %v583
    %585 = vmatmul.bf16.gmra.mxu0 %v480
    %v586 = vpop.f32.mrf.mxu0
    %v587 = vadd.f32 %v507, %v586
    %v588 = vpop.f32.mrf.mxu0
    %v589 = vadd.f32 %v507, %v588
    %590 = vmatmul.bf16.gmra.mxu0 %v481
    %v591 = vpop.f32.mrf.mxu0
    %v592 = vadd.f32 %v507, %v591
    %v593 = vpop.f32.mrf.mxu0
    %v594 = vadd.f32 %v507, %v593
    %595 = vmatmul.bf16.gmra.mxu0 %v482
    %v596 = vpop.f32.mrf.mxu0
    %v597 = vadd.f32 %v507, %v596
    %v598 = vpop.f32.mrf.mxu0
    %v599 = vadd.f32 %v507, %v598
    %600 = vmatmul.bf16.gmra.mxu0 %v483
    %v601 = vpop.f32.mrf.mxu0
    %v602 = vadd.f32 %v507, %v601
    %v603 = vpop.f32.mrf.mxu0
    %v604 = vadd.f32 %v507, %v603
    %605 = vmatmul.bf16.gmra.mxu0 %v484
    %v606 = vpop.f32.mrf.mxu0
    %v607 = vadd.f32 %v507, %v606
    %v608 = vpop.f32.mrf.mxu0
    %v609 = vadd.f32 %v507, %v608
    %610 = vmatmul.bf16.gmra.mxu0 %v485
    %v611 = vpop.f32.mrf.mxu0
    %v612 = vadd.f32 %v507, %v611
    %v613 = vpop.f32.mrf.mxu0
    %v614 = vadd.f32 %v507, %v613
    %615 = vmatmul.bf16.gmra.mxu0 %v486
    %v616 = vpop.f32.mrf.mxu0
    %v617 = vadd.f32 %v507, %v616
    %v618 = vpop.f32.mrf.mxu0
    %v619 = vadd.f32 %v507, %v618
    %620 = vmatmul.bf16.gmra.mxu0 %v487
    %v621 = vpop.f32.mrf.mxu0
    %v622 = vadd.f32 %v507, %v621
    %v623 = vpop.f32.mrf.mxu0
    %v624 = vadd.f32 %v507, %v623
    %625 = vmatmul.bf16.gmra.mxu0 %v488
    %v626 = vpop.f32.mrf.mxu0
    %v627 = vadd.f32 %v507, %v626
    %v628 = vpop.f32.mrf.mxu0
    %v629 = vadd.f32 %v507, %v628
    %630 = vdwg.mxu0
    %v631 = vpack.c.bf16 %v567, %v567
    %v632 = vpack.c.bf16 %v569, %v569
    %v633 = vpack.c.bf16 %v572, %v572
    %v634 = vpack.c.bf16 %v574, %v574
    %v635 = vpack.c.bf16 %v577, %v577
    %v636 = vpack.c.bf16 %v579, %v579
    %v637 = vpack.c.bf16 %v582, %v582
    %v638 = vpack.c.bf16 %v584, %v584
    %v639 = vpack.c.bf16 %v587, %v587
    %v640 = vpack.c.bf16 %v589, %v589
    %v641 = vpack.c.bf16 %v592, %v592
    %v642 = vpack.c.bf16 %v594, %v594
    %v643 = vpack.c.bf16 %v597, %v597
    %v644 = vpack.c.bf16 %v599, %v599
    %v645 = vpack.c.bf16 %v602, %v602
    %v646 = vpack.c.bf16 %v604, %v604
    %v647 = vpack.c.bf16 %v607, %v607
    %v648 = vpack.c.bf16 %v609, %v609
    %v649 = vpack.c.bf16 %v612, %v612
    %v650 = vpack.c.bf16 %v614, %v614
    %v651 = vpack.c.bf16 %v617, %v617
    %v652 = vpack.c.bf16 %v619, %v619
    %v653 = vpack.c.bf16 %v622, %v622
    %v654 = vpack.c.bf16 %v624, %v624
    %v655 = vpack.c.bf16 %v627, %v627
    %v656 = vpack.c.bf16 %v629, %v629
    %657 = vst [vmem:[#allocation5] sm:$0xf] %v631
    %658 = vst [vmem:[#allocation5 + $0x4] sm:$0xf] %v632
    %659 = vst [vmem:[#allocation5 + $0x8] sm:$0xf] %v633
    %660 = vst [vmem:[#allocation5 + $0xc] sm:$0xf] %v634
    %661 = vst [vmem:[#allocation5 + $0x10] sm:$0xf] %v635
    %662 = vst [vmem:[#allocation5 + $0x14] sm:$0xf] %v636
    %663 = vst [vmem:[#allocation5 + $0x18] sm:$0xf] %v637
    %664 = vst [vmem:[#allocation5 + $0x1c] sm:$0xf] %v638
    %665 = vst [vmem:[#allocation5 + $0x20] sm:$0xf] %v639
    %666 = vst [vmem:[#allocation5 + $0x24] sm:$0xf] %v640
    %667 = vst [vmem:[#allocation5 + $0x28] sm:$0xf] %v641
    %668 = vst [vmem:[#allocation5 + $0x2c] sm:$0xf] %v642
    %669 = vst [vmem:[#allocation5 + $0x30] sm:$0xf] %v643
    %670 = vst [vmem:[#allocation5 + $0x34] sm:$0xf] %v644
    %671 = vst [vmem:[#allocation5 + $0x38] sm:$0xf] %v645
    %672 = vst [vmem:[#allocation5 + $0x3c] sm:$0xf] %v646
    %673 = vst [vmem:[#allocation5 + $0x40] sm:$0xf] %v647
    %674 = vst [vmem:[#allocation5 + $0x44] sm:$0xf] %v648
    %675 = vst [vmem:[#allocation5 + $0x48] sm:$0xf] %v649
    %676 = vst [vmem:[#allocation5 + $0x4c] sm:$0xf] %v650
    %677 = vst [vmem:[#allocation5 + $0x50] sm:$0xf] %v651
    %678 = vst [vmem:[#allocation5 + $0x54] sm:$0xf] %v652
    %679 = vst [vmem:[#allocation5 + $0x58] sm:$0xf] %v653
    %680 = vst [vmem:[#allocation5 + $0x5c] sm:$0xf] %v654
    %681 = vst [vmem:[#allocation5 + $0x60] sm:$0xf] %v655
    %682 = vst [vmem:[#allocation5 + $0x64] sm:$0xf] %v656
    // Predicated region
    $region34: #{tpu_custom_call.1} parent=1 // pred_check
      _
    $region35: #{tpu_custom_call.1} parent=1 // pred_check_branch
      %684 = sbr.rel (0) target = $region37
    $region36: #{tpu_custom_call.1} parent=1 // pred_region
      %686 = vsyncadd [#allocation4], 0
      %s687 = sshll.u32 [#allocation5], 4
      %s688 = int_to_ptr.vmem [resolvable:$true] %s687
      %s689 = sshll.u32 %s7, 4
      %s690 = int_to_ptr.hbm [resolvable:$true] %s689
      %695 = dma.vmem_to_hbm [thread:$0]  %s688, 1664, %s690, [#allocation4], 64, 64, 4
    $region37: #{tpu_custom_call.1} parent=1 // pred_fallthru
      _
    // Predicated region
    $region38: #{tpu_custom_call.1} parent=1 // pred_check
      _
    $region39: #{tpu_custom_call.1} parent=1 // pred_check_branch
      %697 = sbr.rel (0) target = $region41
    $region40: #{tpu_custom_call.1} parent=1 // pred_region
      %699 = dma.done [#allocation4], 1664
    $region41: #{tpu_custom_call.1} parent=1 // pred_fallthru
      _
    %700 = vsyncpa [#allocation3], 1
    %701 = vsyncpa [#allocation4], 1

</llo_original>
